<compile_context>
chip_gen: v7x
topology: tpu7x:2x2x1
jax: 0.10.0
libtpu: 0.0.40
codegen_flags: <defaults>
</compile_context>

<pallas_src>
import functools

import jax
import jax.numpy as jnp
from jax.experimental import pallas as pl
from jax.experimental.pallas import tpu as pltpu


def _layernorm_kernel(x_ref, g_ref, o_ref, *, eps, inv_c):
    # x_ref: (TB, C, TL), g_ref: (1, C, 1), o_ref: (TB, C, TL)

    # Pass 1: mean over the channel (sublane) axis.
    mean = jnp.sum(x_ref[...].astype(jnp.float32), axis=1, keepdims=True) * inv_c

    # Pass 2: two-pass variance on the already-resident tile (no cancellation).
    centered = x_ref[...].astype(jnp.float32) - mean          # (TB, C, TL)
    var = jnp.sum(centered * centered, axis=1, keepdims=True) * inv_c
    rstd = jax.lax.rsqrt(var + eps)                            # (TB, 1, TL), EUP

    # Fold gain with rstd so the (TB, C, TL) broadcast is emitted once.
    scale = g_ref[...].astype(jnp.float32) * rstd              # (TB, C, TL)

    # Pass 3: normalize.  Re-cast x_ref so the load/cast fuses per-vreg
    # instead of keeping a full f32 copy live across all three phases.
    o_ref[...] = ((x_ref[...].astype(jnp.float32) - mean) * scale).astype(o_ref.dtype)


def _pick_tiles(B, C, L, itemsize, max_block_bytes):
    """Pick (TB, TL): lane-dense TL (multiple of 128), TB fills the byte budget."""
    # Lane tile: as large as the budget allows, multiple of 128, capped at L.
    tl = (max_block_bytes // (C * itemsize)) // 128 * 128
    tl = max(tl, 128)           # minimum lane-dense tile (may overshoot budget for huge C)
    if tl >= L:
        tl = L                  # full lane extent satisfies the (8,128) rule

    # Batch tile: fill the remaining budget.
    tb = max_block_bytes // (C * tl * itemsize)
    tb = max(1, min(tb, B))

    # Guarantee >= 2 grid steps when possible so v7x's 2 TensorCores both run.
    if pl.cdiv(B, tb) * pl.cdiv(L, tl) < 2:
        if tb > 1:
            tb = pl.cdiv(B, 2)
        elif L > 128:
            tl = max(128, pl.cdiv(pl.cdiv(L, 2), 128) * 128)
    return tb, tl


def _vmem_limit_bytes(tb, C, tl, itemsize):
    """Budget: double-buffered in + out blocks, f32 intermediates, slack."""
    c_pad = ((C + 15) // 16) * 16         # sublane padding (covers bf16 packing)
    tl_pad = ((tl + 127) // 128) * 128    # lane padding
    block = tb * c_pad * tl_pad * itemsize
    f32_tile = tb * c_pad * tl_pad * 4
    budget = 4 * block + 4 * f32_tile + (4 << 20)
    # Never go below the default scoped limit; cap at physical VMEM order.
    return int(min(max(budget, 32 << 20), 128 << 20))


def layer_norm(x, g, *, max_block_bytes=2 * 1024 * 1024):
    """x: (B, C, L), g: (1, C, 1)  ->  (B, C, L); normalization over C."""
    B, C, L = x.shape
    eps = 1e-5 if x.dtype == jnp.float32 else 1e-3
    itemsize = x.dtype.itemsize

    tb, tl = _pick_tiles(B, C, L, itemsize, max_block_bytes)
    n_b = pl.cdiv(B, tb)
    n_l = pl.cdiv(L, tl)

    kernel = functools.partial(_layernorm_kernel, eps=eps, inv_c=1.0 / C)
    return pl.pallas_call(
        kernel,
        out_shape=jax.ShapeDtypeStruct((B, C, L), x.dtype),
        grid=(n_b, n_l),
        in_specs=[
            pl.BlockSpec((tb, C, tl), lambda b, l: (b, 0, l)),   # per-(batch-tile, L-tile) slab
            pl.BlockSpec((1, C, 1), lambda b, l: (0, 0, 0)),     # gain, shared across the grid
        ],
        out_specs=pl.BlockSpec((tb, C, tl), lambda b, l: (b, 0, l)),
        compiler_params=pltpu.CompilerParams(
            dimension_semantics=("parallel", "parallel"),
            vmem_limit_bytes=_vmem_limit_bytes(tb, C, tl, itemsize),
        ),
    )(x, g)


def layer_norm_ref(x, g, eps=None):
    if eps is None:
        eps = 1e-5 if x.dtype == jnp.float32 else 1e-3
    mean = jnp.mean(x, axis=1, keepdims=True)
    var = jnp.mean((x - mean) ** 2, axis=1, keepdims=True)
    return (x - mean) * jax.lax.rsqrt(var + eps) * g


if __name__ == "__main__":
    B, C, L = 2, 16, 256  # batch, channels (normalized dim), sequence length

    key = jax.random.PRNGKey(0)
    k0, k1 = jax.random.split(key)
    # Non-zero-mean data exercises the two-pass variance path.
    x = jax.random.normal(k0, (B, C, L), dtype=jnp.float32) + 3.0
    g = jnp.ones((1, C, 1), dtype=jnp.float32)  # module __init__: g = ones(1, dim, 1)

    # 1) default budget: TL == L; >=2-grid-step guarantee splits the batch axis.
    out = jax.block_until_ready(layer_norm(x, g))
    ref = layer_norm_ref(x, g)
    assert out.shape == (B, C, L)
    assert jnp.allclose(out, ref, atol=1e-5, rtol=1e-5), "mismatch vs reference"

    # 2) force the lane-tiled path (TL = 128 -> grid (2, 2)).
    out_tiled = jax.block_until_ready(layer_norm(x, g, max_block_bytes=128 * C * 4))
    assert jnp.allclose(out_tiled, ref, atol=1e-5, rtol=1e-5), "tiled mismatch"

    # 3) batch-tiled path with TB > 1 (grid (4, 1)).
    B2 = 8
    x2 = jax.random.normal(k1, (B2, C, L), dtype=jnp.float32) - 1.5
    out2 = jax.block_until_ready(layer_norm(x2, g, max_block_bytes=2 * C * L * 4))
    ref2 = layer_norm_ref(x2, g)
    assert jnp.allclose(out2, ref2, atol=1e-5, rtol=1e-5), "batch-tiled mismatch"

    # 4) bf16 path: eps = 1e-3 and dtype-aware tile budget; f32 accumulation in-kernel.
    xb = x.astype(jnp.bfloat16)
    gb = g.astype(jnp.bfloat16)
    outb = jax.block_until_ready(layer_norm(xb, gb))
    refb = layer_norm_ref(xb.astype(jnp.float32), g, eps=1e-3)
    assert jnp.allclose(outb.astype(jnp.float32), refb, atol=2e-2, rtol=2e-2), "bf16 mismatch"

    print("KERNEL_OK")
</pallas_src>

<mosaic_0001>
module attributes {stable_mosaic.version = 11 : i64} {
  func.func @_layernorm_kernel(%arg0: i32, %arg1: i32, %arg2: memref<1x16x256xf32, #tpu.memory_space<vmem>>, %arg3: memref<1x16x1xf32, #tpu.memory_space<vmem>>, %arg4: memref<1x16x256xf32, #tpu.memory_space<vmem>>) attributes {dimension_semantics = [#tpu.dimension_semantics<parallel>, #tpu.dimension_semantics<parallel>], iteration_bounds = array<i64: 2, 1>, scalar_prefetch = 0 : i64, scratch_operands = 0 : i64, tpu.core_type = #tpu.core_type<tc>, window_params = [{transform_indices = @transform_0, window_bounds = array<i64: 1, 16, 256>}, {pipeline_mode = #tpu.pipeline_mode<synchronous>, transform_indices = @transform_1, window_bounds = array<i64: 1, 16, 1>}, {transform_indices = @transform_2, window_bounds = array<i64: 1, 16, 256>}]} {
    %c0 = arith.constant 0 : index
    %c0_0 = arith.constant 0 : index
    %c0_1 = arith.constant 0 : index
    %0 = vector.load %arg2[%c0, %c0_0, %c0_1] : memref<1x16x256xf32, #tpu.memory_space<vmem>>, vector<1x16x256xf32>
    %cst = arith.constant dense<0.000000e+00> : vector<1x256xf32>
    %1 = vector.multi_reduction <add>, %0, %cst [1] : vector<1x16x256xf32> to vector<1x256xf32>
    %2 = vector.shape_cast %1 : vector<1x256xf32> to vector<1x1x256xf32>
    %cst_2 = arith.constant 6.250000e-02 : f32
    %3 = vector.broadcast %cst_2 : f32 to vector<1x1x256xf32>
    %4 = arith.mulf %2, %3 : vector<1x1x256xf32>
    %c0_3 = arith.constant 0 : index
    %c0_4 = arith.constant 0 : index
    %c0_5 = arith.constant 0 : index
    %5 = vector.load %arg2[%c0_3, %c0_4, %c0_5] : memref<1x16x256xf32, #tpu.memory_space<vmem>>, vector<1x16x256xf32>
    %6 = vector.broadcast %4 : vector<1x1x256xf32> to vector<1x16x256xf32>
    %7 = arith.subf %5, %6 : vector<1x16x256xf32>
    %8 = arith.mulf %7, %7 : vector<1x16x256xf32>
    %cst_6 = arith.constant dense<0.000000e+00> : vector<1x256xf32>
    %9 = vector.multi_reduction <add>, %8, %cst_6 [1] : vector<1x16x256xf32> to vector<1x256xf32>
    %10 = vector.shape_cast %9 : vector<1x256xf32> to vector<1x1x256xf32>
    %cst_7 = arith.constant 6.250000e-02 : f32
    %11 = vector.broadcast %cst_7 : f32 to vector<1x1x256xf32>
    %12 = arith.mulf %10, %11 : vector<1x1x256xf32>
    %cst_8 = arith.constant 9.99999974E-6 : f32
    %13 = vector.broadcast %cst_8 : f32 to vector<1x1x256xf32>
    %14 = arith.addf %12, %13 : vector<1x1x256xf32>
    %15 = math.rsqrt %14 : vector<1x1x256xf32>
    %c0_9 = arith.constant 0 : index
    %c0_10 = arith.constant 0 : index
    %c0_11 = arith.constant 0 : index
    %16 = vector.load %arg3[%c0_9, %c0_10, %c0_11] : memref<1x16x1xf32, #tpu.memory_space<vmem>>, vector<1x16x1xf32>
    %17 = vector.broadcast %16 : vector<1x16x1xf32> to vector<1x16x256xf32>
    %18 = vector.broadcast %15 : vector<1x1x256xf32> to vector<1x16x256xf32>
    %19 = arith.mulf %17, %18 : vector<1x16x256xf32>
    %c0_12 = arith.constant 0 : index
    %c0_13 = arith.constant 0 : index
    %c0_14 = arith.constant 0 : index
    %20 = vector.load %arg2[%c0_12, %c0_13, %c0_14] : memref<1x16x256xf32, #tpu.memory_space<vmem>>, vector<1x16x256xf32>
    %21 = vector.broadcast %4 : vector<1x1x256xf32> to vector<1x16x256xf32>
    %22 = arith.subf %20, %21 : vector<1x16x256xf32>
    %23 = arith.mulf %22, %19 : vector<1x16x256xf32>
    %c0_15 = arith.constant 0 : index
    %c0_16 = arith.constant 0 : index
    %c0_17 = arith.constant 0 : index
    %24 = vector.load %arg4[%c0_15, %c0_16, %c0_17] : memref<1x16x256xf32, #tpu.memory_space<vmem>>, vector<1x16x256xf32>
    tpu.vector_store %arg4[%c0_15, %c0_16, %c0_17], %23 {strides = array<i32>} : memref<1x16x256xf32, #tpu.memory_space<vmem>>, vector<1x16x256xf32>,
    return
  }
  func.func @transform_0(%arg0: i32, %arg1: i32) -> (i32, i32, i32) {
    %c0_i32 = arith.constant 0 : i32
    %c0_i32_0 = arith.constant 0 : i32
    return %arg0, %c0_i32, %arg1 : i32, i32, i32
  }
  func.func @transform_1(%arg0: i32, %arg1: i32) -> (i32, i32, i32) {
    %c0_i32 = arith.constant 0 : i32
    %c0_i32_0 = arith.constant 0 : i32
    %c0_i32_1 = arith.constant 0 : i32
    %c0_i32_2 = arith.constant 0 : i32
    return %c0_i32, %c0_i32_0, %c0_i32_1 : i32, i32, i32
  }
  func.func @transform_2(%arg0: i32, %arg1: i32) -> (i32, i32, i32) {
    %c0_i32 = arith.constant 0 : i32
    %c0_i32_0 = arith.constant 0 : i32
    return %arg0, %c0_i32, %arg1 : i32, i32, i32
  }
}

</mosaic_0001>

<llo_original>
// kernel: tpu_custom_call.1
$region0: #{tpu_custom_call.1}
  #allocation0 [shape = 'u32[]', space=smem, size = 0x4, offset = 0x4, fixed_abs, tag = 'smem constant byte address 0x4 - core index']
  #allocation1 [shape = 'u32[144,128]{1,0:T(1,128)}', space=vmem, size = 0x12000, scoped, tag = 'internal scratch']
  %s0 = inlined_call_operand.hbm [shape: f32[2,16,256], index: 0, kind: input, shape index: {}]
  %s1 = inlined_call_operand.vmem [shape: f32[1,16,1], index: 1, kind: input, shape index: {}]
  %s2 = inlined_call_operand.hbm [shape: f32[2,16,256], index: 2, kind: output, shape index: {}]
  %s3 = sld [smem:[#allocation0]]
  $region45: #{tpu_custom_call.1} parent=0
    _
  %s5 = ssub.s32 1, %s3
  %s6 = scalar_select 0, %s5, %s3
  $region1: #{tpu_custom_call.1} parent=0
    #allocation2 [shape = 'u8[32768]{0}', space=vmem, size = 0x8000, scoped, tag = 'input window, operand 0']
    #allocation3 [shape = 's32[2]{0}', space=sflag, size = 0x8, scoped, tag = 'scoped memory for tpu_custom_call.1']
    #allocation4 [shape = 's32[2]{0}', space=sflag, size = 0x8, scoped, tag = 'scoped memory for tpu_custom_call.1']
    #allocation5 [shape = 'u8[32768]{0}', space=vmem, size = 0x8000, scoped, tag = 'output window, operand 0']
    %7 = vsyncpa [#allocation3], 0
    %s8 = scalar_lea.sflag [#allocation3], 1
    %9 = vsyncpa %s8, 0
    %10 = vsyncpa [#allocation4], 0
    %s11 = scalar_lea.sflag [#allocation4], 1
    %12 = vsyncpa %s11, 0
    loop: start=0, step=1, limit=4
    $region2: #{tpu_custom_call.1} parent=1 // loop_pre_header
      _
    $region3: #{tpu_custom_call.1} parent=1 // loop_header
      %s14 = sphi 0, %s18
      %p15 = scmp.ge.s32.totalorder %s14, 4
      %s21 = sphi 0, %s33
      %s22 = sphi 0, %s29
      %s23 = sphi 0, %s21
      %s24 = sphi 0, %s22
      %s25 = sphi 0, %s23
      %s26 = sphi 0, %s24
      %s38 = sphi 0, %s40
      %s41 = sphi 0, %s38
      %s42 = sphi 0, %s41
      %s58 = sphi 0, %s42
      %s62 = sphi 0, %s62
      %s64 = sphi 0, %s62
      %s65 = sphi 0, %s64
      %s79 = sphi 0, %s65
      %s87 = sphi 0, %s89
      %s90 = sphi 0, %s87
      %s91 = sphi 0, %s90
      %s107 = sphi 0, %s91
    $region4: #{tpu_custom_call.1} parent=1 // loop_header_branch
      %17 = sbr.rel (%p15) target = $region8
    $region5: #{tpu_custom_call.1} parent=1 // loop_body
      %s19 = ssub.s32 %s14, 1
      %s20 = ssub.s32 %s14, 2
      %s27 = sadd.s32 1, %s22
      %p28 = scmp.ge.s32.totalorder %s27, 1
      %s29 = scalar_select %p28, 0, %s27
      %s30 = sadd.s32 1, %s21
      %s31 = scalar_select %p28, %s30, %s21
      %p32 = scmp.ge.s32.totalorder %s31, 2
      %s33 = scalar_select %p32, 0, %s31
      %s34 = ssub.s32 %s21, %s33
      %s35 = ssub.s32 %s22, %s29
      %s36 = sor.u32 %s34, %s35
      %p37 = scmp.eq.s32.totalorder %s36, 0
      %s39 = sadd.s32 %s38, 1
      %s40 = scalar_select %p37, %s38, %s39
      %p43 = pneg %p37
      %p44 = scmp.eq.s32.totalorder %s14, 1
      %p45 = por %p43, %p44
      %p46 = scmp.ne.s32.totalorder %s38, %s41
      %p47 = scmp.eq.s32.totalorder %s14, 0
      %p48 = por %p46, %p47
      %p49 = scmp.ne.s32.totalorder %s38, %s41
      %p50 = scmp.eq.s32.totalorder %s19, 1
      %p51 = por %p49, %p50
      %p52 = scmp.ne.s32.totalorder %s41, %s42
      %p53 = scmp.eq.s32.totalorder %s19, 0
      %p54 = por %p52, %p53
      %p55 = scmp.ne.s32.totalorder %s41, %s42
      %p56 = scmp.eq.s32.totalorder %s20, 1
      %p57 = por %p55, %p56
      %p59 = scmp.ne.s32.totalorder %s42, %s58
      %p60 = scmp.eq.s32.totalorder %s20, 0
      %p61 = por %p59, %p60
      %s63 = sadd.s32 %s62, 1
      %p66 = scmp.eq.s32.totalorder %s14, 1
      %p67 = scmp.ne.s32.totalorder %s62, %s64
      %p68 = scmp.eq.s32.totalorder %s14, 0
      %p69 = por %p67, %p68
      %p70 = scmp.ne.s32.totalorder %s62, %s64
      %p71 = scmp.eq.s32.totalorder %s19, 1
      %p72 = por %p70, %p71
      %p73 = scmp.ne.s32.totalorder %s64, %s65
      %p74 = scmp.eq.s32.totalorder %s19, 0
      %p75 = por %p73, %p74
      %p76 = scmp.ne.s32.totalorder %s64, %s65
      %p77 = scmp.eq.s32.totalorder %s20, 1
      %p78 = por %p76, %p77
      %p80 = scmp.ne.s32.totalorder %s65, %s79
      %p81 = scmp.eq.s32.totalorder %s20, 0
      %p82 = por %p80, %p81
      %s83 = ssub.s32 %s21, %s33
      %s84 = ssub.s32 %s22, %s29
      %s85 = sor.u32 %s83, %s84
      %p86 = scmp.eq.s32.totalorder %s85, 0
      %s88 = sadd.s32 %s87, 1
      %s89 = scalar_select %p86, %s87, %s88
      %p92 = pneg %p86
      %p93 = scmp.eq.s32.totalorder %s14, 1
      %p94 = por %p92, %p93
      %p95 = scmp.ne.s32.totalorder %s87, %s90
      %p96 = scmp.eq.s32.totalorder %s14, 0
      %p97 = por %p95, %p96
      %p98 = scmp.ne.s32.totalorder %s87, %s90
      %p99 = scmp.eq.s32.totalorder %s19, 1
      %p100 = por %p98, %p99
      %p101 = scmp.ne.s32.totalorder %s90, %s91
      %p102 = scmp.eq.s32.totalorder %s19, 0
      %p103 = por %p101, %p102
      %p104 = scmp.ne.s32.totalorder %s90, %s91
      %p105 = scmp.eq.s32.totalorder %s20, 1
      %p106 = por %p104, %p105
      %p108 = scmp.ne.s32.totalorder %s91, %s107
      %p109 = scmp.eq.s32.totalorder %s20, 0
      %p110 = por %p108, %p109
      %p111 = scmp.le.s32.totalorder 1, %s14
      %p112 = scmp.lt.s32.totalorder %s14, 3
      %p113 = pnand %p111, %p112
      %p114 = pneg %p113
      // Predicated region
      $region9: #{tpu_custom_call.1} parent=5 // pred_check
        _
      $region10: #{tpu_custom_call.1} parent=5 // pred_check_branch
        %116 = sbr.rel (%p113) target = $region12
      $region11: #{tpu_custom_call.1} parent=5 // pred_region
        %s117 = ssub.s32 %s14, 1
        // Predicated region
        $region13: #{tpu_custom_call.1} parent=11 // pred_check
          %p118 = pneg %p75
        $region14: #{tpu_custom_call.1} parent=11 // pred_check_branch
          %120 = sbr.rel (%p118) target = $region16
        $region15: #{tpu_custom_call.1} parent=11 // pred_region
          _
        $region16: #{tpu_custom_call.1} parent=11 // pred_fallthru
          _
      $region12: #{tpu_custom_call.1} parent=5 // pred_fallthru
        _
      %p121 = scmp.lt.s32.totalorder %s14, 2
      // Predicated region
      $region17: #{tpu_custom_call.1} parent=5 // pred_check
        %p122 = pneg %p121
      $region18: #{tpu_custom_call.1} parent=5 // pred_check_branch
        %124 = sbr.rel (%p122) target = $region20
      $region19: #{tpu_custom_call.1} parent=5 // pred_region
        // Predicated region
        $region21: #{tpu_custom_call.1} parent=19 // pred_check
          %p125 = pneg %p48
        $region22: #{tpu_custom_call.1} parent=19 // pred_check_branch
          %127 = sbr.rel (%p125) target = $region24
        $region23: #{tpu_custom_call.1} parent=19 // pred_region
          %s128 = sand.u32 %s38, 1
          %s129 = scalar_lea.sflag [#allocation3], %s128
          %s130 = sand.u32 %s38, 1
          %s131 = smul.addr %s130, 32
          %s132 = scalar_lea.vmem [#allocation2], %s131
          %s133 = smul.u32 2, %s22
          %s135 = ssub.s32 512, 512
          %136 = vsyncadd %s129, %s135
          %s137 = smul.addr %s21, 4
          %s138 = sadd.s32 %s133, %s137
          %s139 = smul.addr %s138, 128
          %s140 = scalar_lea.hbm %s0, %s139
          %s141 = sshll.u32 %s132, 4
          %s142 = int_to_ptr.vmem [resolvable:$true] %s141
          %147 = dma.hbm_to_vmem [thread:$0]  %s140, 512, %s142, %s129, 256, 256, 16
        $region24: #{tpu_custom_call.1} parent=19 // pred_fallthru
          _
      $region20: #{tpu_custom_call.1} parent=5 // pred_fallthru
        _
      %p148 = scmp.le.s32.totalorder 1, %s14
      %p149 = scmp.lt.s32.totalorder %s14, 3
      %p150 = pnand %p148, %p149
      %p151 = pneg %p150
      // Predicated region
      $region25: #{tpu_custom_call.1} parent=5 // pred_check
        _
      $region26: #{tpu_custom_call.1} parent=5 // pred_check_branch
        %153 = sbr.rel (%p150) target = $region28
      $region27: #{tpu_custom_call.1} parent=5 // pred_region
        %s154 = ssub.s32 %s14, 1
        %s155 = sand.u32 %s41, 1
        %s156 = scalar_lea.sflag [#allocation3], %s155
        %s157 = sand.u32 %s41, 1
        %s158 = smul.addr %s157, 32
        %s159 = scalar_lea.vmem [#allocation2], %s158
        // Predicated region
        $region29: #{tpu_custom_call.1} parent=27 // pred_check
          %p160 = pneg %p54
        $region30: #{tpu_custom_call.1} parent=27 // pred_check_branch
          %162 = sbr.rel (%p160) target = $region32
        $region31: #{tpu_custom_call.1} parent=27 // pred_region
          %163 = dma.done %s156, 512
        $region32: #{tpu_custom_call.1} parent=27 // pred_fallthru
          _
        %s164 = sand.u32 %s41, 1
        %s165 = scalar_lea.sflag [#allocation3], %s164
        %s166 = sand.u32 %s41, 1
        %s167 = smul.addr %s166, 32
        %s168 = scalar_lea.vmem [#allocation2], %s167
        %p169 = pneg %p54
        %p170 = pneg %p51
        %p171 = pneg %p75
        %p172 = pneg %p72
        %p173 = pneg %p103
        %p174 = pneg %p100
        %s175 = sand.u32 %s90, 1
        %s176 = scalar_lea.sflag [#allocation4], %s175
        %s177 = sand.u32 %s90, 1
        %s178 = smul.addr %s177, 32
        %s179 = scalar_lea.vmem [#allocation5], %s178
        %s180 = smul.u32 2, %s24
        %s181 = smul.u32 2, %s24
        %v182 = vld [vmem:[%s159] sm:$0xff]
        %v183 = vld [vmem:[%s159 + $0x8] sm:$0xff]
        %v184 = vld [vmem:[%s159 + $0x10] sm:$0xff]
        %v185 = vld [vmem:[%s159 + $0x18] sm:$0xff]
        %v186 = vadd.f32 %v182, %v184
        %v187 = vrot.slane %v186, 4
        %v188 = vadd.f32 %v186, %v187
        %v189 = vrot.slane %v188, 2
        %v190 = vadd.f32 %v188, %v189
        %v191 = vrot.slane %v190, 1
        %v192 = vadd.f32 %v190, %v191
        %v193 = vadd.f32 %v183, %v185
        %v194 = vrot.slane %v193, 4
        %v195 = vadd.f32 %v193, %v194
        %v196 = vrot.slane %v195, 2
        %v197 = vadd.f32 %v195, %v196
        %v198 = vrot.slane %v197, 1
        %v199 = vadd.f32 %v197, %v198
        %v200 = vmul.f32 %v192, 0.0625
        %v201 = vmul.f32 %v199, 0.0625
        %v202 = vsub.f32 %v182, %v200
        %v203 = vsub.f32 %v183, %v201
        %v204 = vsub.f32 %v184, %v200
        %v205 = vsub.f32 %v185, %v201
        %v206 = vmul.f32 %v202, %v202
        %v207 = vmul.f32 %v203, %v203
        %v208 = vmul.f32 %v204, %v204
        %v209 = vmul.f32 %v205, %v205
        %v210 = vadd.f32 %v206, %v208
        %v211 = vrot.slane %v210, 4
        %v212 = vadd.f32 %v210, %v211
        %v213 = vrot.slane %v212, 2
        %v214 = vadd.f32 %v212, %v213
        %v215 = vrot.slane %v214, 1
        %v216 = vadd.f32 %v214, %v215
        %v217 = vadd.f32 %v207, %v209
        %v218 = vrot.slane %v217, 4
        %v219 = vadd.f32 %v217, %v218
        %v220 = vrot.slane %v219, 2
        %v221 = vadd.f32 %v219, %v220
        %v222 = vrot.slane %v221, 1
        %v223 = vadd.f32 %v221, %v222
        %v224 = vmul.f32 %v216, 0.0625
        %v225 = vmul.f32 %v223, 0.0625
        %v226 = vadd.f32 %v224, 1e-05
        %v227 = vadd.f32 %v225, 1e-05
        %v228 = vrsqrt.pop %v226
        %v229 = vrsqrt.pop %v227
        %v230 = vld [vmem:[%s1] sm:$0xff]
        %v231 = vld [vmem:[%s1 + $0x8] sm:$0xff]
        %233 = vset.pattern.permute.xlu0 0
        %234 = vperm.xlu0 %233, %v230
        %v235 = vpop.permute.xlu0 %234
        %238 = vset.pattern.permute.xlu0 0
        %239 = vperm.xlu0 %238, %v231
        %v240 = vpop.permute.xlu0 %239
        %v242 = vmul.f32 %v235, %v228
        %v243 = vmul.f32 %v235, %v229
        %v244 = vmul.f32 %v240, %v228
        %v245 = vmul.f32 %v240, %v229
        %v246 = vmul.f32 %v202, %v242
        %v247 = vmul.f32 %v203, %v243
        %v248 = vmul.f32 %v204, %v244
        %v249 = vmul.f32 %v205, %v245
        %250 = vst [vmem:[%s179] sm:$0xff] %v246
        %251 = vst [vmem:[%s179 + $0x8] sm:$0xff] %v247
        %252 = vst [vmem:[%s179 + $0x10] sm:$0xff] %v248
        %253 = vst [vmem:[%s179 + $0x18] sm:$0xff] %v249
        %s254 = sand.u32 %s90, 1
        %s255 = scalar_lea.sflag [#allocation4], %s254
        %s256 = sand.u32 %s90, 1
        %s257 = smul.addr %s256, 32
        %s258 = scalar_lea.vmem [#allocation5], %s257
        // Predicated region
        $region33: #{tpu_custom_call.1} parent=27 // pred_check
          %p259 = pneg %p100
        $region34: #{tpu_custom_call.1} parent=27 // pred_check_branch
          %261 = sbr.rel (%p259) target = $region36
        $region35: #{tpu_custom_call.1} parent=27 // pred_region
          %s262 = smul.u32 2, %s24
          %s264 = ssub.s32 512, 512
          %265 = vsyncadd %s255, %s264
          %s266 = smul.addr %s23, 4
          %s267 = sadd.s32 %s262, %s266
          %s268 = smul.addr %s267, 128
          %s269 = scalar_lea.hbm %s2, %s268
          %s270 = sshll.u32 %s258, 4
          %s271 = int_to_ptr.vmem [resolvable:$true] %s270
          %276 = dma.vmem_to_hbm [thread:$0]  %s271, 512, %s269, %s255, 256, 256, 16
        $region36: #{tpu_custom_call.1} parent=27 // pred_fallthru
          _
      $region28: #{tpu_custom_call.1} parent=5 // pred_fallthru
        _
      %p277 = scmp.le.s32.totalorder 2, %s14
      // Predicated region
      $region37: #{tpu_custom_call.1} parent=5 // pred_check
        %p278 = pneg %p277
      $region38: #{tpu_custom_call.1} parent=5 // pred_check_branch
        %280 = sbr.rel (%p278) target = $region40
      $region39: #{tpu_custom_call.1} parent=5 // pred_region
        %s281 = ssub.s32 %s14, 2
        // Predicated region
        $region41: #{tpu_custom_call.1} parent=39 // pred_check
          %p282 = pneg %p106
        $region42: #{tpu_custom_call.1} parent=39 // pred_check_branch
          %284 = sbr.rel (%p282) target = $region44
        $region43: #{tpu_custom_call.1} parent=39 // pred_region
          %s285 = sand.u32 %s91, 1
          %s286 = scalar_lea.sflag [#allocation4], %s285
          %s287 = sand.u32 %s91, 1
          %s288 = smul.addr %s287, 32
          %s289 = scalar_lea.vmem [#allocation5], %s288
          %290 = dma.done %s286, 512
        $region44: #{tpu_custom_call.1} parent=39 // pred_fallthru
          _
      $region40: #{tpu_custom_call.1} parent=5 // pred_fallthru
        _
    $region6: #{tpu_custom_call.1} parent=1 // loop_footer
      %s18 = sadd.s32 1, %s14
    $region7: #{tpu_custom_call.1} parent=1 // loop_footer_branch
      %13 = sbr.rel target = $region3
    $region8: #{tpu_custom_call.1} parent=1 // loop_exit
      _
    %291 = vsyncpa [#allocation3], 1
    %s292 = scalar_lea.sflag [#allocation3], 1
    %293 = vsyncpa %s292, 1
    %294 = vsyncpa [#allocation4], 1
    %s295 = scalar_lea.sflag [#allocation4], 1
    %296 = vsyncpa %s295, 1

</llo_original>
